<compile_context>
chip_gen: v7x
topology: tpu7x:2x2x1
jax: 0.10.0
libtpu: 0.0.40
codegen_flags: <defaults>
</compile_context>

<pallas_src>
import numpy as np
import jax
import jax.numpy as jnp
from jax.experimental import pallas as pl
from jax.experimental.pallas import tpu as pltpu


def _gfe_kernel(x_ref, b_ref, phase_ref, out_ref):
    # x_ref    : (tile, pack * d_in)        native dtype
    # b_ref    : (pack*d_in, pack*embed_dim) f32, block-diag, pre-scaled by 2*pi
    # phase_ref: (1, pack*embed_dim)         f32, 0 for cos cols, -pi/2 for sin cols
    # out_ref  : (tile, pack*embed_dim)      out_dtype
    x = x_ref[...].astype(jnp.float32)
    y = jnp.dot(x, b_ref[...], preferred_element_type=jnp.float32)
    out_ref[...] = jnp.cos(y + phase_ref[...]).astype(out_ref.dtype)


def gaussian_fourier_embedding(x, B, embed_dim, *, tile_tokens=8192,
                               out_dtype=jnp.float32):
    """x: (..., d_in) float.  B: (half_dim, d_in) float.

    out_dtype=jnp.bfloat16 halves output HBM traffic (useful on v5e/v6e when the
    consumer tolerates bf16); default f32 matches the reference numerics.
    """
    half_dim = embed_dim // 2 + 1
    assert B.shape[0] == half_dim
    sin_cols = embed_dim - half_dim
    d_in = x.shape[-1]
    lead = x.shape[:-1]
    rows = int(np.prod(lead)) if lead else 1

    if rows == 0:
        return jnp.zeros((*lead, embed_dim), dtype=out_dtype)

    # ---- token packing: make the output last dim a full 128-lane multiple ----
    if embed_dim < 128 and 128 % embed_dim == 0:
        pack = 128 // embed_dim
    else:
        pack = 1

    x_flat = x.reshape(rows, d_in)               # native dtype, no astype copy
    pad_rows = (-rows) % pack
    if pad_rows:
        x_flat = jnp.concatenate(
            [x_flat, jnp.zeros((pad_rows, d_in), x_flat.dtype)], axis=0)
    rows_p = rows + pad_rows
    p_rows = rows_p // pack
    n_k = pack * d_in
    n_out = pack * embed_dim
    x_packed = x_flat.reshape(p_rows, n_k)

    # ---- one-off constant prep: B2 (block-diag, cos|sin columns) + phase ----
    bT = (2.0 * np.pi) * B.astype(jnp.float32).T                  # (d_in, half_dim)
    per_pack_b = jnp.concatenate([bT, bT[:, :sin_cols]], axis=1)  # (d_in, embed_dim)
    if pack == 1:
        b2 = per_pack_b
    else:
        b2 = jnp.kron(jnp.eye(pack, dtype=jnp.float32), per_pack_b)  # (n_k, n_out)
    per_pack_phase = jnp.concatenate(
        [jnp.zeros((half_dim,), jnp.float32),
         jnp.full((sin_cols,), -0.5 * np.pi, jnp.float32)])
    phase = jnp.tile(per_pack_phase, pack).reshape(1, n_out)      # cos(y+phase)

    # ---- row tiling ----
    out_itemsize = jnp.dtype(out_dtype).itemsize
    sub = 16 if out_itemsize < 4 else 8            # (16,128) min tile for bf16
    tile_p = max(1, tile_tokens // pack)
    # Keep >= 2 grid steps on large inputs so v7x's 2 TensorCores both get work.
    if p_rows * n_out * out_itemsize > (4 << 20):
        tile_p = min(tile_p, pl.cdiv(p_rows, 2))
    tile_p = min(tile_p, p_rows)
    tile_p = max(sub, (tile_p // sub) * sub)
    grid = (pl.cdiv(p_rows, tile_p),)

    # ---- VMEM budget: double-buffered x + out blocks, plus constants ----
    x_block_bytes = tile_p * n_k * jnp.dtype(x_packed.dtype).itemsize
    out_block_bytes = tile_p * n_out * out_itemsize
    need = 2 * (x_block_bytes + out_block_bytes) + b2.size * 4 + n_out * 4
    vmem_limit = int(min(max(need + (4 << 20), 16 << 20), 60 << 20))

    cost = pl.CostEstimate(
        flops=2 * rows * d_in * embed_dim,
        transcendentals=rows * embed_dim,
        bytes_accessed=(x_packed.size * jnp.dtype(x_packed.dtype).itemsize
                        + b2.size * 4 + rows_p * embed_dim * out_itemsize),
    )

    out_flat = pl.pallas_call(
        _gfe_kernel,
        out_shape=jax.ShapeDtypeStruct((p_rows, n_out), out_dtype),
        grid_spec=pltpu.PrefetchScalarGridSpec(
            num_scalar_prefetch=0,
            grid=grid,
            in_specs=[
                pl.BlockSpec((tile_p, n_k), lambda i: (i, 0)),
                pl.BlockSpec((n_k, n_out), lambda i: (0, 0)),
                pl.BlockSpec((1, n_out), lambda i: (0, 0)),
            ],
            out_specs=pl.BlockSpec((tile_p, n_out), lambda i: (i, 0)),
        ),
        compiler_params=pltpu.CompilerParams(
            dimension_semantics=("parallel",),
            vmem_limit_bytes=vmem_limit,
        ),
        cost_estimate=cost,
    )(x_packed, b2, phase)

    # Contiguous un-pack (and drop padded rows if any), then restore lead dims.
    out = out_flat.reshape(rows_p, embed_dim)
    if pad_rows:
        out = out[:rows]
    return out.reshape(*lead, embed_dim)


if __name__ == "__main__":
    embed_dim = 64
    half_dim = embed_dim // 2 + 1

    key = jax.random.PRNGKey(0)
    kx, kb = jax.random.split(key)
    # Small shapes: batch=2, seq=8, feature dim=4 -> x: (2, 8, 4)
    x = jax.random.normal(kx, (2, 8, 4), dtype=jnp.float32)
    # TODO(synk): PyTorch resamples B ~ N(0,1) every forward call; here it is a
    # fixed deterministic parameter so the kernel is reproducible.
    B = jax.random.normal(kb, (half_dim, x.shape[-1]), dtype=jnp.float32)

    out = gaussian_fourier_embedding(x, B, embed_dim)
    out = jax.block_until_ready(out)

    # Plain-JAX reference (matches the PyTorch forward for this fixed B).
    y_ref = 2.0 * np.pi * jnp.matmul(x, B.T)
    ref = jnp.concatenate([jnp.cos(y_ref), jnp.sin(y_ref)], axis=-1)[..., :embed_dim]
    np.testing.assert_allclose(np.asarray(out), np.asarray(ref),
                               rtol=1e-5, atol=5e-5)

    assert out.shape == (2, 8, embed_dim)
    print("KERNEL_OK")
</pallas_src>

<mosaic_0001>
module attributes {stable_mosaic.version = 11 : i64} {
  func.func @_gfe_kernel(%arg0: i32, %arg1: memref<8x8xf32, #tpu.memory_space<vmem>>, %arg2: memref<8x128xf32, #tpu.memory_space<vmem>>, %arg3: memref<1x128xf32, #tpu.memory_space<vmem>>, %arg4: memref<8x128xf32, #tpu.memory_space<vmem>>) attributes {dimension_semantics = [#tpu.dimension_semantics<parallel>], iteration_bounds = array<i64: 1>, scalar_prefetch = 0 : i64, scratch_operands = 0 : i64, tpu.core_type = #tpu.core_type<tc>, window_params = [{transform_indices = @transform_0, window_bounds = array<i64: 8, 8>}, {pipeline_mode = #tpu.pipeline_mode<synchronous>, transform_indices = @transform_1, window_bounds = array<i64: 8, 128>}, {pipeline_mode = #tpu.pipeline_mode<synchronous>, transform_indices = @transform_2, window_bounds = array<i64: 1, 128>}, {transform_indices = @transform_3, window_bounds = array<i64: 8, 128>}]} {
    %c0 = arith.constant 0 : index
    %c0_0 = arith.constant 0 : index
    %0 = vector.load %arg1[%c0, %c0_0] : memref<8x8xf32, #tpu.memory_space<vmem>>, vector<8x8xf32>
    %c0_1 = arith.constant 0 : index
    %c0_2 = arith.constant 0 : index
    %1 = vector.load %arg2[%c0_1, %c0_2] : memref<8x128xf32, #tpu.memory_space<vmem>>, vector<8x128xf32>
    %cst = arith.constant dense<0.000000e+00> : vector<8x128xf32>
    %2 = tpu.matmul %0, %1, %cst {dimension_numbers = #tpu.dot_dimension_numbers<[1], [0], [0], [1], [0, 0, 1, 1], [], []>} : vector<8x8xf32>, vector<8x128xf32>, vector<8x128xf32> -> vector<8x128xf32>
    %c0_3 = arith.constant 0 : index
    %c0_4 = arith.constant 0 : index
    %3 = vector.load %arg3[%c0_3, %c0_4] : memref<1x128xf32, #tpu.memory_space<vmem>>, vector<1x128xf32>
    %4 = vector.broadcast %3 : vector<1x128xf32> to vector<8x128xf32>
    %5 = arith.addf %2, %4 : vector<8x128xf32>
    %6 = math.cos %5 : vector<8x128xf32>
    %c0_5 = arith.constant 0 : index
    %c0_6 = arith.constant 0 : index
    %7 = vector.load %arg4[%c0_5, %c0_6] : memref<8x128xf32, #tpu.memory_space<vmem>>, vector<8x128xf32>
    tpu.vector_store %arg4[%c0_5, %c0_6], %6 {strides = array<i32>} : memref<8x128xf32, #tpu.memory_space<vmem>>, vector<8x128xf32>,
    return
  }
  func.func @transform_0(%arg0: i32) -> (i32, i32) {
    %c0_i32 = arith.constant 0 : i32
    %c0_i32_0 = arith.constant 0 : i32
    return %arg0, %c0_i32 : i32, i32
  }
  func.func @transform_1(%arg0: i32) -> (i32, i32) {
    %c0_i32 = arith.constant 0 : i32
    %c0_i32_0 = arith.constant 0 : i32
    %c0_i32_1 = arith.constant 0 : i32
    return %c0_i32, %c0_i32_0 : i32, i32
  }
  func.func @transform_2(%arg0: i32) -> (i32, i32) {
    %c0_i32 = arith.constant 0 : i32
    %c0_i32_0 = arith.constant 0 : i32
    %c0_i32_1 = arith.constant 0 : i32
    return %c0_i32, %c0_i32_0 : i32, i32
  }
  func.func @transform_3(%arg0: i32) -> (i32, i32) {
    %c0_i32 = arith.constant 0 : i32
    %c0_i32_0 = arith.constant 0 : i32
    return %arg0, %c0_i32 : i32, i32
  }
}

</mosaic_0001>

<llo_original>
// kernel: tpu_custom_call.1
$region0: #{tpu_custom_call.1}
  #allocation0 [shape = 'u32[]', space=smem, size = 0x4, offset = 0x4, fixed_abs, tag = 'smem constant byte address 0x4 - core index']
  #allocation1 [shape = 'u32[144,128]{1,0:T(1,128)}', space=vmem, size = 0x12000, scoped, tag = 'internal scratch']
  %s0 = inlined_call_operand.hbm [shape: f32[8,8], index: 0, kind: input, shape index: {}]
  %s1 = inlined_call_operand.hbm [shape: f32[8,128], index: 1, kind: input, shape index: {}]
  %s2 = inlined_call_operand.vmem [shape: f32[1,128], index: 2, kind: input, shape index: {}]
  %s3 = inlined_call_operand.hbm [shape: f32[8,128], index: 3, kind: output, shape index: {}]
  %s4 = sld [smem:[#allocation0]]
  $region30: #{tpu_custom_call.1} parent=0
    _
  %s6 = ssub.s32 1, %s4
  %s7 = scalar_select 0, %s6, %s4
  $region1: #{tpu_custom_call.1} parent=0
    #allocation2 [shape = 'u8[4096]{0}', space=vmem, size = 0x1000, scoped, tag = 'input window, operand 0, single buffered']
    #allocation3 [shape = 's32[1]{0}', space=sflag, size = 0x4, scoped, tag = 'scoped memory for tpu_custom_call.1']
    #allocation4 [shape = 's32[1]{0}', space=sflag, size = 0x4, scoped, tag = 'scoped memory for tpu_custom_call.1']
    #allocation5 [shape = 'u8[4096]{0}', space=vmem, size = 0x1000, scoped, tag = 'input window, operand 1, single buffered']
    #allocation6 [shape = 's32[1]{0}', space=sflag, size = 0x4, scoped, tag = 'scoped memory for tpu_custom_call.1']
    #allocation7 [shape = 'u8[4096]{0}', space=vmem, size = 0x1000, scoped, tag = 'output window, operand 0, single buffered']
    %8 = vsyncpa [#allocation3], 0
    %9 = vsyncpa [#allocation6], 0
    %10 = vsyncpa [#allocation4], 0
    // Predicated region
    $region2: #{tpu_custom_call.1} parent=1 // pred_check
      _
    $region3: #{tpu_custom_call.1} parent=1 // pred_check_branch
      %12 = sbr.rel (0) target = $region5
    $region4: #{tpu_custom_call.1} parent=1 // pred_region
      %s14 = ssub.s32 128, 128
      %15 = vsyncadd [#allocation3], %s14
      %s17 = sshll.u32 [#allocation2], 4
      %s18 = int_to_ptr.vmem [resolvable:$true] %s17
      %20 = dma.hbm_to_vmem [thread:$0]  %s0, 128, %s18, [#allocation3]
    $region5: #{tpu_custom_call.1} parent=1 // pred_fallthru
      _
    // Predicated region
    $region6: #{tpu_custom_call.1} parent=1 // pred_check
      _
    $region7: #{tpu_custom_call.1} parent=1 // pred_check_branch
      %22 = sbr.rel (0) target = $region9
    $region8: #{tpu_custom_call.1} parent=1 // pred_region
      %s24 = ssub.s32 128, 128
      %25 = vsyncadd [#allocation6], %s24
      %s27 = sshll.u32 [#allocation5], 4
      %s28 = int_to_ptr.vmem [resolvable:$true] %s27
      %30 = dma.hbm_to_vmem [thread:$0]  %s1, 128, %s28, [#allocation6]
    $region9: #{tpu_custom_call.1} parent=1 // pred_fallthru
      _
    // Predicated region
    $region10: #{tpu_custom_call.1} parent=1 // pred_check
      _
    $region11: #{tpu_custom_call.1} parent=1 // pred_check_branch
      %32 = sbr.rel (0) target = $region13
    $region12: #{tpu_custom_call.1} parent=1 // pred_region
      _
    $region13: #{tpu_custom_call.1} parent=1 // pred_fallthru
      _
    // Predicated region
    $region14: #{tpu_custom_call.1} parent=1 // pred_check
      _
    $region15: #{tpu_custom_call.1} parent=1 // pred_check_branch
      %34 = sbr.rel (0) target = $region17
    $region16: #{tpu_custom_call.1} parent=1 // pred_region
      %35 = dma.done [#allocation3], 128
    $region17: #{tpu_custom_call.1} parent=1 // pred_fallthru
      _
    // Predicated region
    $region18: #{tpu_custom_call.1} parent=1 // pred_check
      _
    $region19: #{tpu_custom_call.1} parent=1 // pred_check_branch
      %37 = sbr.rel (0) target = $region21
    $region20: #{tpu_custom_call.1} parent=1 // pred_region
      %38 = dma.done [#allocation6], 128
    $region21: #{tpu_custom_call.1} parent=1 // pred_fallthru
      _
    %v39 = vld [vmem:[#allocation2] sm:$0xff]
    %v40 = vld [vmem:[#allocation5] sm:$0xff]
    %v41 = vld [vmem:[%s2] sm:$0x1]
    %v43 = vlaneseq
    %v44 = vshrl.u32 %v43, 7
    %v45 = vsub.s32 0, %v44
    %v46 = vrot.slane %v41, %v45
    %vm48 = vcmask 64512
    %v50 = vsel %vm48, %v39, 0
    %52 = vmatprep.subr.mxu0 0.0
    %53 = vmatpush1.msra.mxu0 %v40
    %54 = vmatprep.subr.mxu0 0.0
    %55 = vmatpush1.msra.mxu0 0.0
    %56 = vmatprep.subr.mxu0 0.0
    %57 = vmatpush1.msra.mxu0 0.0
    %58 = vmatprep.subr.mxu0 0.0
    %59 = vmatpush1.msra.mxu0 0.0
    %60 = vmatprep.subr.mxu0 0.0
    %61 = vmatpush1.msra.mxu0 0.0
    %62 = vmatprep.subr.mxu0 0.0
    %63 = vmatpush1.msra.mxu0 0.0
    %64 = vmatprep.subr.mxu0 0.0
    %65 = vmatpush1.msra.mxu0 0.0
    %66 = vmatprep.subr.mxu0 0.0
    %67 = vmatpush1.msra.mxu0 0.0
    %68 = vmatprep.subr.mxu0 0.0
    %69 = vmatpush1.msra.mxu0 0.0
    %70 = vmatprep.subr.mxu0 0.0
    %71 = vmatpush1.msra.mxu0 0.0
    %72 = vmatprep.subr.mxu0 0.0
    %73 = vmatpush1.msra.mxu0 0.0
    %74 = vmatprep.subr.mxu0 0.0
    %75 = vmatpush1.msra.mxu0 0.0
    %76 = vmatprep.subr.mxu0 0.0
    %77 = vmatpush1.msra.mxu0 0.0
    %78 = vmatprep.subr.mxu0 0.0
    %79 = vmatpush1.msra.mxu0 0.0
    %80 = vmatprep.subr.mxu0 0.0
    %81 = vmatpush1.msra.mxu0 0.0
    %82 = vmatprep.subr.mxu0 0.0
    %83 = vmatpush1.msra.mxu0 0.0
    %84 = vmatprep.subr.mxu0 0.0
    %85 = vmatpush1.msra.mxu0 0.0
    %86 = vmatprep.subr.mxu0 0.0
    %87 = vmatpush1.msra.mxu0 0.0
    %88 = vmatprep.subr.mxu0 0.0
    %89 = vmatpush1.msra.mxu0 0.0
    %90 = vmatprep.subr.mxu0 0.0
    %91 = vmatpush1.msra.mxu0 0.0
    %92 = vmatprep.subr.mxu0 0.0
    %93 = vmatpush1.msra.mxu0 0.0
    %94 = vmatprep.subr.mxu0 0.0
    %95 = vmatpush1.msra.mxu0 0.0
    %96 = vmatprep.subr.mxu0 0.0
    %97 = vmatpush1.msra.mxu0 0.0
    %98 = vmatprep.subr.mxu0 0.0
    %99 = vmatpush1.msra.mxu0 0.0
    %100 = vmatprep.subr.mxu0 0.0
    %101 = vmatpush1.msra.mxu0 0.0
    %102 = vmatprep.subr.mxu0 0.0
    %103 = vmatpush1.msra.mxu0 0.0
    %104 = vmatprep.subr.mxu0 0.0
    %105 = vmatpush1.msra.mxu0 0.0
    %106 = vmatprep.subr.mxu0 0.0
    %107 = vmatpush1.msra.mxu0 0.0
    %108 = vmatprep.subr.mxu0 0.0
    %109 = vmatpush1.msra.mxu0 0.0
    %110 = vmatprep.subr.mxu0 0.0
    %111 = vmatpush1.msra.mxu0 0.0
    %112 = vmatprep.subr.mxu0 0.0
    %113 = vmatpush1.msra.mxu0 0.0
    %114 = vmatprep.subr.mxu0 0.0
    %115 = vmatpush1.msra.mxu0 0.0
    %116 = vmatprep.mubr.f32.mxu0 0.0
    %117 = vmatmul.mubr.f32.gmra.mrb[0].mxu0 %v50
    %v118 = vpop.f32.mrb[0].mxu0
    %v119 = vadd.f32 %v46, %v118
    %v120 = vpop.f32.mrb[0].mxu0
    %121 = vdwg.mxu0
    %v122 = vand.u32 2147483647, %v119
    %vm123 = vcmp.le.f32.partialorder %v122, 0.7853982
    %vm124 = vcmp.lt.s32.totalorder %v119, 0
    %v125 = vand.u32 %v119, 2139095040
    %v126 = vshrl.u32 %v125, 23
    %v127 = vsub.s32 %v126, 127
    %v128 = vand.u32 2147483647, %v119
    %v129 = vand.u32 %v128, 8388607
    %v130 = vor.u32 %v129, 8388608
    %v131 = vsub.s32 0, %v130
    %v132 = vadd.s32 %v127, 1
    %vm133 = vcmp.gt.s32.totalorder %v132, 0
    %v134 = vsel %vm133, %v132, 0
    %v135 = vshrl.u32 %v134, 5
    %v136 = vand.u32 %v134, 31
    %v137 = vsub.s32 32, %v136
    %v138 = vshrl.u32 683565275, %v137
    %v139 = vshll.u32 683565275, %v136
    %v140 = vshrl.u32 2475754826, %v137
    %v141 = vor.u32 %v139, %v140
    %v142 = vshll.u32 2475754826, %v136
    %v143 = vshrl.u32 2131351028, %v137
    %v144 = vor.u32 %v142, %v143
    %v145 = vshll.u32 2131351028, %v136
    %v146 = vshrl.u32 2102212464, %v137
    %v147 = vor.u32 %v145, %v146
    %v148 = vshll.u32 2102212464, %v136
    %v149 = vshrl.u32 920167782, %v137
    %v150 = vor.u32 %v148, %v149
    %v151 = vshll.u32 920167782, %v136
    %v152 = vshrl.u32 1326507024, %v137
    %v153 = vor.u32 %v151, %v152
    %vm154 = vcmp.lt.s32.totalorder %v135, 1
    %vm155 = vcmp.lt.s32.totalorder %v135, 2
    %vm156 = vcmp.lt.s32.totalorder %v135, 3
    %vm157 = vcmp.lt.s32.totalorder %v135, 4
    %v158 = vsel %vm154, %v138, %v141
    %v159 = vsel %vm157, %v147, 2102212464
    %v160 = vsel %vm156, %v144, %v159
    %v161 = vsel %vm155, %v158, %v160
    %v162 = vsel %vm154, %v141, %v144
    %v163 = vsel %vm157, %v150, 920167782
    %v164 = vsel %vm156, %v147, %v163
    %v165 = vsel %vm155, %v162, %v164
    %v166 = vsel %vm154, %v144, %v147
    %v167 = vsel %vm157, %v153, 1326507024
    %v168 = vsel %vm156, %v150, %v167
    %v169 = vsel %vm155, %v166, %v168
    %v170 = vshll.u32 %v130, 8
    %v171 = vmul.u32.u64.compose %v170, %v169
    %v172 = vextract.low.u32 %v171
    %v173 = vextract.high.u32 %v171
    %v174 = vmul.u32.u64.compose %v170, %v165
    %v175 = vextract.low.u32 %v174
    %v176 = vextract.high.u32 %v174
    %v177 = vmul.u32 %v170, %v161
    %v178 = vadd.s32 %v173, %v175
    %vm179 = vc.u32 %v173, %v175
    %v180 = vadd.s32 %v176, 1
    %v181 = vsel %vm179, %v180, %v176
    %v182 = vadd.s32 %v177, %v181
    %v183 = vadd.s32 %v182, 536870912
    %v184 = vshrl.u32 %v183, 30
    %v185 = vshll.u32 %v184, 30
    %v186 = vsub.s32 %v182, %v185
    %vm187 = vcmp.lt.s32.totalorder %v186, 0
    %v188 = vsub.s32 0, %v186
    %v189 = vsel %vm187, %v188, %v186
    %v190 = vclz %v189
    %v191 = vsub.s32 %v190, 2
    %vm192 = vcmp.gt.s32.totalorder 0, %v191
    %v193 = vsel %vm192, 0, %v191
    %v194 = vsub.s32 32, %v193
    %v195 = vshll.u32 %v186, %v193
    %v196 = vshrl.u32 %v178, %v194
    %v197 = vor.u32 %v195, %v196
    %v198 = vsub.s32 4294967266, %v193
    %v199 = vadd.s32 %v198, 127
    %v200 = vshll.u32 %v199, 23
    %v201 = vor.u32 4788187, %v200
    %v202 = vand.u32 2147483647, %v201
    %v204 = vcvt.s32.f32 %v197
    %v205 = vmul.f32 %v204, %v202
    %v206 = vxor.u32 %v205, 2147483648
    %v207 = vsel %vm124, %v206, %v205
    %v208 = vsub.s32 4, %v184
    %v209 = vsel %vm124, %v208, %v184
    %v210 = vsel %vm123, %v119, %v207
    %v211 = vsel %vm123, 0, %v209
    %v212 = vcosq.f32.pop %v210
    %v213 = vsinq.f32.pop %v210
    %vm214 = vweird.f32 %v119
    %v215 = vand.u32 %v211, 3
    %vm216 = vcmp.lt.s32.totalorder %v215, 2
    %vm217 = vcmp.eq.s32.totalorder %v215, 0
    %v218 = vxor.u32 %v213, 2147483648
    %v219 = vsel %vm217, %v212, %v218
    %vm220 = vcmp.eq.s32.totalorder %v215, 2
    %v221 = vxor.u32 %v212, 2147483648
    %v222 = vsel %vm220, %v221, %v213
    %v223 = vsel %vm216, %v219, %v222
    %v224 = vsel %vm214, nan, %v223
    %225 = vst [vmem:[#allocation7] sm:$0xff] %v224
    // Predicated region
    $region22: #{tpu_custom_call.1} parent=1 // pred_check
      _
    $region23: #{tpu_custom_call.1} parent=1 // pred_check_branch
      %227 = sbr.rel (0) target = $region25
    $region24: #{tpu_custom_call.1} parent=1 // pred_region
      %s229 = ssub.s32 128, 128
      %230 = vsyncadd [#allocation4], %s229
      %s232 = sshll.u32 [#allocation7], 4
      %s233 = int_to_ptr.vmem [resolvable:$true] %s232
      %235 = dma.vmem_to_hbm [thread:$0]  %s233, 128, %s3, [#allocation4]
    $region25: #{tpu_custom_call.1} parent=1 // pred_fallthru
      _
    // Predicated region
    $region26: #{tpu_custom_call.1} parent=1 // pred_check
      _
    $region27: #{tpu_custom_call.1} parent=1 // pred_check_branch
      %237 = sbr.rel (0) target = $region29
    $region28: #{tpu_custom_call.1} parent=1 // pred_region
      %238 = dma.done [#allocation4], 128
    $region29: #{tpu_custom_call.1} parent=1 // pred_fallthru
      _
    %239 = vsyncpa [#allocation3], 1
    %240 = vsyncpa [#allocation6], 1
    %241 = vsyncpa [#allocation4], 1

</llo_original>
